<compile_context>
chip_gen: v6e
topology: v6e:2x2x1
jax: 0.10.0
libtpu: 0.0.40
codegen_flags: <defaults>
</compile_context>

<pallas_src>
import jax
import jax.numpy as jnp
from jax.experimental import pallas as pl
from jax.experimental.pallas import tpu as pltpu


# ---------------------------------------------------------------------------
# Kernel body (identical for the zero-copy-split and padded-split paths).
# ---------------------------------------------------------------------------
def _isotropic_gaussian_kernel(mu_ref, logvar_ref, mu_upd_ref, var_raw_ref,
                               eps_ref, sample_ref, mu_new_ref,
                               logvar_new_ref):
    mu = mu_ref[...]
    logvar = logvar_ref[...]
    mu_update = mu_upd_ref[...]
    var_raw = var_raw_ref[...]
    noise = eps_ref[...]

    # F.softplus (numerically stable log(1 + exp(x)))
    sp = jnp.maximum(var_raw, 0.0) + jnp.log1p(jnp.exp(-jnp.abs(var_raw)))

    # update_add: mu += mu_update ; logvar = log(exp(logvar)*exp(sp) + 1e-9)
    # fused: exp(logvar)*exp(sp) == exp(logvar + sp)
    mu_new = mu + mu_update
    var = jnp.exp(logvar + sp) + 1e-9
    logvar_new = jnp.log(var)

    # sample: mu + exp(logvar_new) * eps  (exp(logvar_new) == var; the
    # reference scales noise by exp(logvar), not std).
    sample = mu_new + var * noise

    sample_ref[...] = sample
    mu_new_ref[...] = mu_new
    logvar_new_ref[...] = logvar_new


# ---------------------------------------------------------------------------
# Tiling policy.
# ---------------------------------------------------------------------------
_VMEM_LIMIT_BYTES = 48 * 1024 * 1024      # <= v7x physical (64 MiB), > default
_FOOTPRINT_BUDGET = 40 * 1024 * 1024      # headroom under the vmem limit
_N_BUFFERS = 16                           # 8 streams x 2 (double-buffered)
_ELEM_BUDGET = _FOOTPRINT_BUDGET // (_N_BUFFERS * 4)   # f32 elems per tile


def _round_up(x, m):
    return ((x + m - 1) // m) * m


def _choose_tiles(Bp, Dp, elem_budget=_ELEM_BUDGET):
    """Pick (TB, TD): lane-aligned, divides (Bp, Dp), prefers full-D rows,
    keeps the 16-buffer double-buffered footprint under the VMEM budget, and
    keeps >= 2 grid blocks when possible (v7x megacore)."""
    # Prefer TD == Dp (long contiguous DMA rows); shrink only if an 8-row
    # full-width tile already exceeds the per-buffer budget.
    if 8 * Dp <= elem_budget:
        TD = Dp
    else:
        td = (elem_budget // 8) // 128 * 128
        while td > 128 and Dp % td != 0:
            td -= 128
        TD = max(td, 128)

    # Largest TB (multiple of 8, divides Bp) under the element budget.
    tb_cap = max(8, (elem_budget // TD) // 8 * 8)
    TB = min(Bp, tb_cap)
    while Bp % TB != 0:
        TB -= 8

    # If the whole problem fits one block, split the batch axis so both v7x
    # TensorCores get work (no-op on single-TC v5e/v6e).
    if (Bp // TB) * (Dp // TD) == 1 and Bp > 8:
        tb2 = min(TB, (Bp // 2) // 8 * 8)
        while tb2 >= 8 and Bp % tb2 != 0:
            tb2 -= 8
        if tb2 >= 8:
            TB = tb2
    return TB, TD


# ---------------------------------------------------------------------------
# Wrapper.
# ---------------------------------------------------------------------------
def isotropic_gaussian_forward(mu, logvar, logits, eps_noise):
    """Returns (sample, mu_new, logvar_new); mu/logvar/eps are (B, D),
    logits is (B, 2*D)."""
    B, D = mu.shape
    assert logits.shape == (B, 2 * D)
    assert logvar.shape == (B, D) and eps_noise.shape == (B, D)

    f32 = jnp.float32
    mu = mu.astype(f32)
    logvar = logvar.astype(f32)
    logits = logits.astype(f32)
    eps_noise = eps_noise.astype(f32)

    Bp = _round_up(B, 8)
    Dp = _round_up(D, 128)
    TB, TD = _choose_tiles(Bp, Dp)
    grid = (Bp // TB, Dp // TD)

    pad_b, pad_d = Bp - B, Dp - D
    padded = bool(pad_b or pad_d)

    def _pad(x):
        return jnp.pad(x, ((0, pad_b), (0, pad_d))) if padded else x

    mu_p, logvar_p, eps_p = _pad(mu), _pad(logvar), _pad(eps_noise)

    bd_spec = pl.BlockSpec((TB, TD), lambda i, j: (i, j))

    if pad_d == 0:
        # Zero-copy split of logits: pass the (Bp, 2*D) array twice; the
        # second spec's index_map offsets into the var_raw half.
        logits_p = (jnp.pad(logits, ((0, pad_b), (0, 0)))
                    if pad_b else logits)
        d_blocks = Dp // TD
        mu_upd_spec = pl.BlockSpec((TB, TD), lambda i, j: (i, j))
        var_raw_spec = pl.BlockSpec((TB, TD), lambda i, j: (i, j + d_blocks))
        mu_upd_arg, var_raw_arg = logits_p, logits_p
    else:
        # Awkward D: split + pad the halves in the wrapper (one extra copy)
        # so every kernel tile stays (8,128)-aligned. Robustness fallback.
        mu_upd_arg = _pad(logits[:, :D])
        var_raw_arg = _pad(logits[:, D:])
        mu_upd_spec = var_raw_spec = bd_spec

    out_shapes = (
        jax.ShapeDtypeStruct((Bp, Dp), f32),  # sample
        jax.ShapeDtypeStruct((Bp, Dp), f32),  # updated mu
        jax.ShapeDtypeStruct((Bp, Dp), f32),  # updated logvar
    )

    sample, mu_new, logvar_new = pl.pallas_call(
        _isotropic_gaussian_kernel,
        out_shape=out_shapes,
        grid=grid,
        in_specs=[bd_spec, bd_spec, mu_upd_spec, var_raw_spec, bd_spec],
        out_specs=(bd_spec, bd_spec, bd_spec),
        compiler_params=pltpu.CompilerParams(
            dimension_semantics=("parallel", "parallel"),
            vmem_limit_bytes=_VMEM_LIMIT_BYTES,
        ),
    )(mu_p, logvar_p, mu_upd_arg, var_raw_arg, eps_p)

    if padded:
        sample = sample[:B, :D]
        mu_new = mu_new[:B, :D]
        logvar_new = logvar_new[:B, :D]
    return sample, mu_new, logvar_new


# ---------------------------------------------------------------------------
# Pure-JAX reference (mirrors the PyTorch module exactly).
# ---------------------------------------------------------------------------
def _reference(mu, logvar, logits, eps_noise):
    D = mu.shape[1]
    mu_update = logits[:, :D]
    var_raw = logits[:, D:]
    sp = jax.nn.softplus(var_raw)
    mu_new = mu + mu_update
    logvar_new = jnp.log(jnp.exp(logvar) * jnp.exp(sp) + 1e-9)
    sample = mu_new + jnp.exp(logvar_new) * eps_noise
    return sample, mu_new, logvar_new


def _run_case(key, B, D):
    k_mu, k_lv, k_logits, k_eps = jax.random.split(key, 4)
    mu = jax.random.normal(k_mu, (B, D), dtype=jnp.float32) * 0.1
    logvar = jax.random.normal(k_lv, (B, D), dtype=jnp.float32) * 0.1 - 1.0
    logits = jax.random.normal(k_logits, (B, 2 * D), dtype=jnp.float32)
    # TODO(synk): PyTorch draws eps via Variable(...).normal_() inside
    # sample(); here the noise is generated deterministically and passed in.
    eps_noise = jax.random.normal(k_eps, (B, D), dtype=jnp.float32)

    outs = isotropic_gaussian_forward(mu, logvar, logits, eps_noise)
    jax.block_until_ready(outs)
    refs = _reference(mu, logvar, logits, eps_noise)
    for got, want in zip(outs, refs):
        assert got.shape == want.shape
        assert jnp.allclose(got, want, atol=1e-5, rtol=1e-5)


if __name__ == "__main__":
    # NOTE: these shapes are intentionally small smoke tests; tile/pipeline
    # tuning targets large (HBM-bound) shapes where the grid has many steps.
    key = jax.random.PRNGKey(0)
    k0, k1 = jax.random.split(key)
    _run_case(k0, B=8, D=256)   # (8,128)-aligned -> zero-copy logits split
    _run_case(k1, B=6, D=200)   # awkward shape -> padded fallback path
    print("KERNEL_OK")
</pallas_src>

<mosaic_0001>
module attributes {stable_mosaic.version = 11 : i64} {
  func.func @_isotropic_gaussian_kernel(%arg0: i32, %arg1: i32, %arg2: memref<8x256xf32, #tpu.memory_space<vmem>>, %arg3: memref<8x256xf32, #tpu.memory_space<vmem>>, %arg4: memref<8x256xf32, #tpu.memory_space<vmem>>, %arg5: memref<8x256xf32, #tpu.memory_space<vmem>>, %arg6: memref<8x256xf32, #tpu.memory_space<vmem>>, %arg7: memref<8x256xf32, #tpu.memory_space<vmem>>, %arg8: memref<8x256xf32, #tpu.memory_space<vmem>>, %arg9: memref<8x256xf32, #tpu.memory_space<vmem>>) attributes {dimension_semantics = [#tpu.dimension_semantics<parallel>, #tpu.dimension_semantics<parallel>], iteration_bounds = array<i64: 1, 1>, scalar_prefetch = 0 : i64, scratch_operands = 0 : i64, tpu.core_type = #tpu.core_type<tc>, window_params = [{transform_indices = @transform_0, window_bounds = array<i64: 8, 256>}, {transform_indices = @transform_1, window_bounds = array<i64: 8, 256>}, {transform_indices = @transform_2, window_bounds = array<i64: 8, 256>}, {transform_indices = @transform_3, window_bounds = array<i64: 8, 256>}, {transform_indices = @transform_4, window_bounds = array<i64: 8, 256>}, {transform_indices = @transform_5, window_bounds = array<i64: 8, 256>}, {transform_indices = @transform_6, window_bounds = array<i64: 8, 256>}, {transform_indices = @transform_7, window_bounds = array<i64: 8, 256>}]} {
    %c0 = arith.constant 0 : index
    %c0_0 = arith.constant 0 : index
    %0 = vector.load %arg2[%c0, %c0_0] : memref<8x256xf32, #tpu.memory_space<vmem>>, vector<8x256xf32>
    %c0_1 = arith.constant 0 : index
    %c0_2 = arith.constant 0 : index
    %1 = vector.load %arg3[%c0_1, %c0_2] : memref<8x256xf32, #tpu.memory_space<vmem>>, vector<8x256xf32>
    %c0_3 = arith.constant 0 : index
    %c0_4 = arith.constant 0 : index
    %2 = vector.load %arg4[%c0_3, %c0_4] : memref<8x256xf32, #tpu.memory_space<vmem>>, vector<8x256xf32>
    %c0_5 = arith.constant 0 : index
    %c0_6 = arith.constant 0 : index
    %3 = vector.load %arg5[%c0_5, %c0_6] : memref<8x256xf32, #tpu.memory_space<vmem>>, vector<8x256xf32>
    %c0_7 = arith.constant 0 : index
    %c0_8 = arith.constant 0 : index
    %4 = vector.load %arg6[%c0_7, %c0_8] : memref<8x256xf32, #tpu.memory_space<vmem>>, vector<8x256xf32>
    %cst = arith.constant 0.000000e+00 : f32
    %5 = vector.broadcast %cst : f32 to vector<8x256xf32>
    %6 = arith.maximumf %3, %5 : vector<8x256xf32>
    %7 = math.absf %3 : vector<8x256xf32>
    %cst_9 = arith.constant 0.000000e+00 : f32
    %8 = vector.broadcast %cst_9 : f32 to vector<8x256xf32>
    %9 = arith.subf %8, %7 : vector<8x256xf32>
    %10 = math.exp %9 : vector<8x256xf32>
    %11 = math.log1p %10 : vector<8x256xf32>
    %12 = arith.addf %6, %11 : vector<8x256xf32>
    %13 = arith.addf %0, %2 : vector<8x256xf32>
    %14 = arith.addf %1, %12 : vector<8x256xf32>
    %15 = math.exp %14 : vector<8x256xf32>
    %cst_10 = arith.constant 9.99999971E-10 : f32
    %16 = vector.broadcast %cst_10 : f32 to vector<8x256xf32>
    %17 = arith.addf %15, %16 : vector<8x256xf32>
    %18 = math.log %17 : vector<8x256xf32>
    %19 = arith.mulf %17, %4 : vector<8x256xf32>
    %20 = arith.addf %13, %19 : vector<8x256xf32>
    %c0_11 = arith.constant 0 : index
    %c0_12 = arith.constant 0 : index
    %21 = vector.load %arg7[%c0_11, %c0_12] : memref<8x256xf32, #tpu.memory_space<vmem>>, vector<8x256xf32>
    tpu.vector_store %arg7[%c0_11, %c0_12], %20 {strides = array<i32>} : memref<8x256xf32, #tpu.memory_space<vmem>>, vector<8x256xf32>,
    %c0_13 = arith.constant 0 : index
    %c0_14 = arith.constant 0 : index
    %22 = vector.load %arg8[%c0_13, %c0_14] : memref<8x256xf32, #tpu.memory_space<vmem>>, vector<8x256xf32>
    tpu.vector_store %arg8[%c0_13, %c0_14], %13 {strides = array<i32>} : memref<8x256xf32, #tpu.memory_space<vmem>>, vector<8x256xf32>,
    %c0_15 = arith.constant 0 : index
    %c0_16 = arith.constant 0 : index
    %23 = vector.load %arg9[%c0_15, %c0_16] : memref<8x256xf32, #tpu.memory_space<vmem>>, vector<8x256xf32>
    tpu.vector_store %arg9[%c0_15, %c0_16], %18 {strides = array<i32>} : memref<8x256xf32, #tpu.memory_space<vmem>>, vector<8x256xf32>,
    return
  }
  func.func @transform_0(%arg0: i32, %arg1: i32) -> (i32, i32) {
    %c0_i32 = arith.constant 0 : i32
    return %arg0, %arg1 : i32, i32
  }
  func.func @transform_1(%arg0: i32, %arg1: i32) -> (i32, i32) {
    %c0_i32 = arith.constant 0 : i32
    return %arg0, %arg1 : i32, i32
  }
  func.func @transform_2(%arg0: i32, %arg1: i32) -> (i32, i32) {
    %c0_i32 = arith.constant 0 : i32
    return %arg0, %arg1 : i32, i32
  }
  func.func @transform_3(%arg0: i32, %arg1: i32) -> (i32, i32) {
    %c1_i32 = arith.constant 1 : i32
    %0 = arith.addi %arg1, %c1_i32 : i32
    %c0_i32 = arith.constant 0 : i32
    return %arg0, %0 : i32, i32
  }
  func.func @transform_4(%arg0: i32, %arg1: i32) -> (i32, i32) {
    %c0_i32 = arith.constant 0 : i32
    return %arg0, %arg1 : i32, i32
  }
  func.func @transform_5(%arg0: i32, %arg1: i32) -> (i32, i32) {
    %c0_i32 = arith.constant 0 : i32
    return %arg0, %arg1 : i32, i32
  }
  func.func @transform_6(%arg0: i32, %arg1: i32) -> (i32, i32) {
    %c0_i32 = arith.constant 0 : i32
    return %arg0, %arg1 : i32, i32
  }
  func.func @transform_7(%arg0: i32, %arg1: i32) -> (i32, i32) {
    %c0_i32 = arith.constant 0 : i32
    return %arg0, %arg1 : i32, i32
  }
}

</mosaic_0001>

<llo_original>
// kernel: tpu_custom_call.1
$region0: #{tpu_custom_call.1}
  #allocation0 [shape = 'u32[]', space=smem, size = 0x4, offset = 0x4, fixed_abs, tag = 'smem constant byte address 0x4 - core index']
  #allocation1 [shape = 'u32[144,128]{1,0:T(1,128)}', space=vmem, size = 0x12000, scoped, tag = 'internal scratch']
  %s0 = inlined_call_operand.hbm [shape: f32[8,256], index: 0, kind: input, shape index: {}]
  %s1 = inlined_call_operand.hbm [shape: f32[8,256], index: 1, kind: input, shape index: {}]
  %s2 = inlined_call_operand.hbm [shape: f32[8,512], index: 2, kind: input, shape index: {}]
  %s3 = inlined_call_operand.hbm [shape: f32[8,512], index: 3, kind: input, shape index: {}]
  %s4 = inlined_call_operand.hbm [shape: f32[8,256], index: 4, kind: input, shape index: {}]
  %s5 = inlined_call_operand.hbm [shape: f32[8,256], index: 5, kind: output, shape index: {0}]
  %s6 = inlined_call_operand.hbm [shape: f32[8,256], index: 6, kind: output, shape index: {1}]
  %s7 = inlined_call_operand.hbm [shape: f32[8,256], index: 7, kind: output, shape index: {2}]
  %8 = xla_tuple %s5, %s6, %s7
  %s9 = sld [smem:[#allocation0]]
  $region66: #{tpu_custom_call.1} parent=0
    _
  %s11 = ssub.s32 1, %s9
  %s12 = scalar_select 0, %s11, %s9
  $region1: #{tpu_custom_call.1} parent=0
    #allocation2 [shape = 'u8[8192]{0}', space=vmem, size = 0x2000, scoped, tag = 'input window, operand 0, single buffered']
    #allocation3 [shape = 's32[1]{0}', space=sflag, size = 0x4, scoped, tag = 'scoped memory for tpu_custom_call.1']
    #allocation4 [shape = 's32[1]{0}', space=sflag, size = 0x4, scoped, tag = 'scoped memory for tpu_custom_call.1']
    #allocation5 [shape = 'u8[8192]{0}', space=vmem, size = 0x2000, scoped, tag = 'input window, operand 1, single buffered']
    #allocation6 [shape = 's32[1]{0}', space=sflag, size = 0x4, scoped, tag = 'scoped memory for tpu_custom_call.1']
    #allocation7 [shape = 'u8[8192]{0}', space=vmem, size = 0x2000, scoped, tag = 'input window, operand 2, single buffered']
    #allocation8 [shape = 'u8[8192]{0}', space=vmem, size = 0x2000, scoped, tag = 'input window, operand 3, single buffered']
    #allocation9 [shape = 's32[1]{0}', space=sflag, size = 0x4, scoped, tag = 'scoped memory for tpu_custom_call.1']
    #allocation10 [shape = 'u8[8192]{0}', space=vmem, size = 0x2000, scoped, tag = 'input window, operand 4, single buffered']
    #allocation11 [shape = 'u8[8192]{0}', space=vmem, size = 0x2000, scoped, tag = 'output window, operand 0, single buffered']
    #allocation12 [shape = 'u8[8192]{0}', space=vmem, size = 0x2000, scoped, tag = 'output window, operand 1, single buffered']
    #allocation13 [shape = 's32[1]{0}', space=sflag, size = 0x4, scoped, tag = 'scoped memory for tpu_custom_call.1']
    #allocation14 [shape = 'u8[8192]{0}', space=vmem, size = 0x2000, scoped, tag = 'output window, operand 2, single buffered']
    %13 = vsyncpa [#allocation3], 0
    %14 = vsyncpa [#allocation6], 0
    %15 = vsyncpa [#allocation9], 0
    %16 = vsyncpa [#allocation4], 0
    %17 = vsyncpa [#allocation13], 0
    // Predicated region
    $region2: #{tpu_custom_call.1} parent=1 // pred_check
      _
    $region3: #{tpu_custom_call.1} parent=1 // pred_check_branch
      %19 = sbr.rel (0) target = $region5
    $region4: #{tpu_custom_call.1} parent=1 // pred_region
      %s21 = ssub.s32 256, 256
      %22 = vsyncadd [#allocation3], %s21
      %s24 = sshll.u32 [#allocation2], 4
      %s25 = int_to_ptr.vmem [resolvable:$true] %s24
      %27 = dma.hbm_to_vmem [thread:$0]  %s0, 256, %s25, [#allocation3]
    $region5: #{tpu_custom_call.1} parent=1 // pred_fallthru
      _
    // Predicated region
    $region6: #{tpu_custom_call.1} parent=1 // pred_check
      _
    $region7: #{tpu_custom_call.1} parent=1 // pred_check_branch
      %29 = sbr.rel (0) target = $region9
    $region8: #{tpu_custom_call.1} parent=1 // pred_region
      %s31 = ssub.s32 256, 256
      %32 = vsyncadd [#allocation6], %s31
      %s34 = sshll.u32 [#allocation5], 4
      %s35 = int_to_ptr.vmem [resolvable:$true] %s34
      %37 = dma.hbm_to_vmem [thread:$0]  %s1, 256, %s35, [#allocation6]
    $region9: #{tpu_custom_call.1} parent=1 // pred_fallthru
      _
    // Predicated region
    $region10: #{tpu_custom_call.1} parent=1 // pred_check
      _
    $region11: #{tpu_custom_call.1} parent=1 // pred_check_branch
      %39 = sbr.rel (0) target = $region13
    $region12: #{tpu_custom_call.1} parent=1 // pred_region
      %s41 = ssub.s32 256, 256
      %42 = vsyncadd [#allocation6], %s41
      %s44 = sshll.u32 [#allocation7], 4
      %s45 = int_to_ptr.vmem [resolvable:$true] %s44
      %47 = dma.hbm_to_vmem [thread:$0]  %s2, 256, %s45, [#allocation6]
    $region13: #{tpu_custom_call.1} parent=1 // pred_fallthru
      _
    // Predicated region
    $region14: #{tpu_custom_call.1} parent=1 // pred_check
      _
    $region15: #{tpu_custom_call.1} parent=1 // pred_check_branch
      %49 = sbr.rel (0) target = $region17
    $region16: #{tpu_custom_call.1} parent=1 // pred_region
      %s50 = sadd.s32 0, 1
      %s51 = smul.u32 2, %s50
      %s53 = ssub.s32 256, 256
      %54 = vsyncadd [#allocation9], %s53
      %s55 = smul.addr %s51, 128
      %s56 = scalar_lea.hbm %s3, %s55
      %s58 = sshll.u32 [#allocation8], 4
      %s59 = int_to_ptr.vmem [resolvable:$true] %s58
      %61 = dma.hbm_to_vmem [thread:$0]  %s56, 256, %s59, [#allocation9]
    $region17: #{tpu_custom_call.1} parent=1 // pred_fallthru
      _
    // Predicated region
    $region18: #{tpu_custom_call.1} parent=1 // pred_check
      _
    $region19: #{tpu_custom_call.1} parent=1 // pred_check_branch
      %63 = sbr.rel (0) target = $region21
    $region20: #{tpu_custom_call.1} parent=1 // pred_region
      %s65 = ssub.s32 256, 256
      %66 = vsyncadd [#allocation9], %s65
      %s68 = sshll.u32 [#allocation10], 4
      %s69 = int_to_ptr.vmem [resolvable:$true] %s68
      %71 = dma.hbm_to_vmem [thread:$0]  %s4, 256, %s69, [#allocation9]
    $region21: #{tpu_custom_call.1} parent=1 // pred_fallthru
      _
    // Predicated region
    $region22: #{tpu_custom_call.1} parent=1 // pred_check
      _
    $region23: #{tpu_custom_call.1} parent=1 // pred_check_branch
      %73 = sbr.rel (0) target = $region25
    $region24: #{tpu_custom_call.1} parent=1 // pred_region
      %74 = dma.done [#allocation3], 256
    $region25: #{tpu_custom_call.1} parent=1 // pred_fallthru
      _
    // Predicated region
    $region26: #{tpu_custom_call.1} parent=1 // pred_check
      _
    $region27: #{tpu_custom_call.1} parent=1 // pred_check_branch
      %76 = sbr.rel (0) target = $region29
    $region28: #{tpu_custom_call.1} parent=1 // pred_region
      %77 = dma.done [#allocation6], 256
    $region29: #{tpu_custom_call.1} parent=1 // pred_fallthru
      _
    // Predicated region
    $region30: #{tpu_custom_call.1} parent=1 // pred_check
      _
    $region31: #{tpu_custom_call.1} parent=1 // pred_check_branch
      %79 = sbr.rel (0) target = $region33
    $region32: #{tpu_custom_call.1} parent=1 // pred_region
      %80 = dma.done [#allocation6], 256
    $region33: #{tpu_custom_call.1} parent=1 // pred_fallthru
      _
    // Predicated region
    $region34: #{tpu_custom_call.1} parent=1 // pred_check
      _
    $region35: #{tpu_custom_call.1} parent=1 // pred_check_branch
      %82 = sbr.rel (0) target = $region37
    $region36: #{tpu_custom_call.1} parent=1 // pred_region
      %83 = dma.done [#allocation9], 256
    $region37: #{tpu_custom_call.1} parent=1 // pred_fallthru
      _
    // Predicated region
    $region38: #{tpu_custom_call.1} parent=1 // pred_check
      _
    $region39: #{tpu_custom_call.1} parent=1 // pred_check_branch
      %85 = sbr.rel (0) target = $region41
    $region40: #{tpu_custom_call.1} parent=1 // pred_region
      %86 = dma.done [#allocation9], 256
    $region41: #{tpu_custom_call.1} parent=1 // pred_fallthru
      _
    %s87 = sadd.s32 0, 1
    %s88 = smul.u32 2, %s87
    %v89 = vld [vmem:[#allocation2] sm:$0xff]
    %v90 = vld [vmem:[#allocation2 + $0x8] sm:$0xff]
    %v91 = vld [vmem:[#allocation5] sm:$0xff]
    %v92 = vld [vmem:[#allocation5 + $0x8] sm:$0xff]
    %v93 = vld [vmem:[#allocation7] sm:$0xff]
    %v94 = vld [vmem:[#allocation7 + $0x8] sm:$0xff]
    %v95 = vld [vmem:[#allocation8] sm:$0xff]
    %v96 = vld [vmem:[#allocation8 + $0x8] sm:$0xff]
    %v97 = vld [vmem:[#allocation10] sm:$0xff]
    %v98 = vld [vmem:[#allocation10 + $0x8] sm:$0xff]
    %v99 = vmax.f32 %v95, 0.0
    %v100 = vmax.f32 %v96, 0.0
    %v101 = vand.u32 2147483647, %v95
    %v102 = vand.u32 2147483647, %v96
    %v103 = vsub.f32 0.0, %v101
    %v104 = vsub.f32 0.0, %v102
    %v105 = vmul.f32 %v103, 1.442695
    %v106 = vpow.pop %v105
    %v107 = vmul.f32 %v104, 1.442695
    %v108 = vpow.pop %v107
    %v109 = vadd.f32 %v106, 1.0
    %v110 = vlog2.pop %v109
    %v111 = vmul.f32 %v110, 0.6931472
    %v112 = vmul.f32 -0.5, %v106
    %v113 = vadd.f32 %v112, 1.0
    %v114 = vmul.f32 %v113, %v106
    %v115 = vand.u32 2147483647, %v106
    %vm116 = vcmp.lt.f32.partialorder %v115, 0.0004427343
    %v117 = vsel %vm116, %v114, %v111
    %v118 = vadd.f32 %v108, 1.0
    %v119 = vlog2.pop %v118
    %v120 = vmul.f32 %v119, 0.6931472
    %v121 = vmul.f32 -0.5, %v108
    %v122 = vadd.f32 %v121, 1.0
    %v123 = vmul.f32 %v122, %v108
    %v124 = vand.u32 2147483647, %v108
    %vm125 = vcmp.lt.f32.partialorder %v124, 0.0004427343
    %v126 = vsel %vm125, %v123, %v120
    %v127 = vadd.f32 %v99, %v117
    %v128 = vadd.f32 %v100, %v126
    %v129 = vadd.f32 %v89, %v93
    %v130 = vadd.f32 %v90, %v94
    %v131 = vadd.f32 %v91, %v127
    %v132 = vadd.f32 %v92, %v128
    %v133 = vmul.f32 %v131, 1.442695
    %v134 = vpow.pop %v133
    %v135 = vmul.f32 %v132, 1.442695
    %v136 = vpow.pop %v135
    %v137 = vadd.f32 %v134, 1e-09
    %v138 = vadd.f32 %v136, 1e-09
    %v139 = vlog2.pop %v137
    %v140 = vmul.f32 %v139, 0.6931472
    %v141 = vlog2.pop %v138
    %v142 = vmul.f32 %v141, 0.6931472
    %v143 = vmul.f32 %v137, %v97
    %v144 = vmul.f32 %v138, %v98
    %v145 = vadd.f32 %v129, %v143
    %v146 = vadd.f32 %v130, %v144
    %147 = vst [vmem:[#allocation11] sm:$0xff] %v145
    %148 = vst [vmem:[#allocation11 + $0x8] sm:$0xff] %v146
    %149 = vst [vmem:[#allocation12] sm:$0xff] %v129
    %150 = vst [vmem:[#allocation12 + $0x8] sm:$0xff] %v130
    %151 = vst [vmem:[#allocation14] sm:$0xff] %v140
    %152 = vst [vmem:[#allocation14 + $0x8] sm:$0xff] %v142
    // Predicated region
    $region42: #{tpu_custom_call.1} parent=1 // pred_check
      _
    $region43: #{tpu_custom_call.1} parent=1 // pred_check_branch
      %154 = sbr.rel (0) target = $region45
    $region44: #{tpu_custom_call.1} parent=1 // pred_region
      %s156 = ssub.s32 256, 256
      %157 = vsyncadd [#allocation4], %s156
      %s159 = sshll.u32 [#allocation11], 4
      %s160 = int_to_ptr.vmem [resolvable:$true] %s159
      %162 = dma.vmem_to_hbm [thread:$0]  %s160, 256, %s5, [#allocation4]
    $region45: #{tpu_custom_call.1} parent=1 // pred_fallthru
      _
    // Predicated region
    $region46: #{tpu_custom_call.1} parent=1 // pred_check
      _
    $region47: #{tpu_custom_call.1} parent=1 // pred_check_branch
      %164 = sbr.rel (0) target = $region49
    $region48: #{tpu_custom_call.1} parent=1 // pred_region
      %s166 = ssub.s32 256, 256
      %167 = vsyncadd [#allocation13], %s166
      %s169 = sshll.u32 [#allocation12], 4
      %s170 = int_to_ptr.vmem [resolvable:$true] %s169
      %172 = dma.vmem_to_hbm [thread:$0]  %s170, 256, %s6, [#allocation13]
    $region49: #{tpu_custom_call.1} parent=1 // pred_fallthru
      _
    // Predicated region
    $region50: #{tpu_custom_call.1} parent=1 // pred_check
      _
    $region51: #{tpu_custom_call.1} parent=1 // pred_check_branch
      %174 = sbr.rel (0) target = $region53
    $region52: #{tpu_custom_call.1} parent=1 // pred_region
      %s176 = ssub.s32 256, 256
      %177 = vsyncadd [#allocation13], %s176
      %s179 = sshll.u32 [#allocation14], 4
      %s180 = int_to_ptr.vmem [resolvable:$true] %s179
      %182 = dma.vmem_to_hbm [thread:$0]  %s180, 256, %s7, [#allocation13]
    $region53: #{tpu_custom_call.1} parent=1 // pred_fallthru
      _
    // Predicated region
    $region54: #{tpu_custom_call.1} parent=1 // pred_check
      _
    $region55: #{tpu_custom_call.1} parent=1 // pred_check_branch
      %184 = sbr.rel (0) target = $region57
    $region56: #{tpu_custom_call.1} parent=1 // pred_region
      %185 = dma.done [#allocation4], 256
    $region57: #{tpu_custom_call.1} parent=1 // pred_fallthru
      _
    // Predicated region
    $region58: #{tpu_custom_call.1} parent=1 // pred_check
      _
    $region59: #{tpu_custom_call.1} parent=1 // pred_check_branch
      %187 = sbr.rel (0) target = $region61
    $region60: #{tpu_custom_call.1} parent=1 // pred_region
      %188 = dma.done [#allocation13], 256
    $region61: #{tpu_custom_call.1} parent=1 // pred_fallthru
      _
    // Predicated region
    $region62: #{tpu_custom_call.1} parent=1 // pred_check
      _
    $region63: #{tpu_custom_call.1} parent=1 // pred_check_branch
      %190 = sbr.rel (0) target = $region65
    $region64: #{tpu_custom_call.1} parent=1 // pred_region
      %191 = dma.done [#allocation13], 256
    $region65: #{tpu_custom_call.1} parent=1 // pred_fallthru
      _
    %192 = vsyncpa [#allocation3], 1
    %193 = vsyncpa [#allocation6], 1
    %194 = vsyncpa [#allocation9], 1
    %195 = vsyncpa [#allocation4], 1
    %196 = vsyncpa [#allocation13], 1

</llo_original>
